<compile_context>
chip_gen: v7x
topology: tpu7x:2x2x1
jax: 0.10.0
libtpu: 0.0.40
codegen_flags: <defaults>
</compile_context>

<pallas_src>
import functools

import jax
import jax.numpy as jnp
from jax.experimental import pallas as pl
from jax.experimental.pallas import tpu as pltpu

SCALING_FACTOR = 10
LANES = 128
SUBLANES = 8


def _cdiv(a, b):
    return (a + b - 1) // b


def _round_up(a, b):
    return _cdiv(a, b) * b


def _srloss_kernel(out2d_ref, tgt2d_ref, out0_ref, inp0_ref, part_ref,
                   *, eta, n_elems, s):
    # ---- term2 partial: BCE over this lane-dense (TR, 128) tile -------------
    o = out2d_ref[...]                                   # (TR, 128) f32
    t = tgt2d_ref[...]
    o_main = jnp.where(o == 0.0, jnp.float32(1e-20), o)
    comp = 1.0 - o
    comp = jnp.where(comp == 0.0, jnp.float32(1e-20), comp)
    bce = t * jnp.log(o_main) + (1.0 - t) * jnp.log(comp)
    lane_sums = jnp.sum(bce, axis=0, keepdims=True)      # (1, 128)

    row_idx = jax.lax.broadcasted_iota(jnp.int32, (SUBLANES, LANES), 0)
    col_idx = jax.lax.broadcasted_iota(jnp.int32, (SUBLANES, LANES), 1)
    inv_n = jnp.float32(1.0 / n_elems)
    # loss contribution of this block: -mean-share of the BCE sum (row 0 only).
    part_ref[...] = jnp.where(row_idx == 0, -(lane_sums * inv_n),
                              jnp.float32(0.0))

    # ---- term1: computed once (grid step 0), added to element (0, 0) --------
    @pl.when(pl.program_id(0) == 0)
    def _():
        BH, W = out0_ref.shape                           # (B*H, W)
        Bh, w = inp0_ref.shape                           # (B*h, w)
        inv_s = jnp.float32(1.0 / s)

        # PT[i, c] = 1/s  iff  c*s <= i < (c+1)*s         (pools along W)
        ii = jax.lax.broadcasted_iota(jnp.int32, (W, w), 0)
        cc = jax.lax.broadcasted_iota(jnp.int32, (W, w), 1)
        PT = jnp.where((ii >= cc * s) & (ii < (cc + 1) * s),
                       inv_s, jnp.float32(0.0))

        # P[r, j] = 1/s  iff  r*s <= j < (r+1)*s  (block-diagonal across batch,
        # pools along H with all batches fused into one matmul)
        rr = jax.lax.broadcasted_iota(jnp.int32, (Bh, BH), 0)
        jj = jax.lax.broadcasted_iota(jnp.int32, (Bh, BH), 1)
        P = jnp.where((jj >= rr * s) & (jj < (rr + 1) * s),
                      inv_s, jnp.float32(0.0))

        xw = jnp.dot(out0_ref[...], PT,
                     preferred_element_type=jnp.float32)            # (BH, w)
        pooled = jnp.dot(P, xw, preferred_element_type=jnp.float32)  # (Bh, w)
        d = inp0_ref[...] - pooled
        term1 = (jnp.float32(eta) * jnp.sum(d * d)
                 * jnp.float32(1.0 / (Bh * w)))

        part_ref[...] = part_ref[...] + jnp.where(
            (row_idx == 0) & (col_idx == 0), term1, jnp.float32(0.0))


def sr_loss(output, target, inp, eta, scaling_factor=SCALING_FACTOR):
    output = output.astype(jnp.float32)
    target = target.astype(jnp.float32)
    B, C, H, W = output.shape
    h, w = H // scaling_factor, W // scaling_factor
    n_elems = B * C * H * W

    # Lane-dense views for the BCE term. Zero padding (output=0, target=0)
    # contributes exactly 0 to the BCE sum, so no masking is needed.
    rows = _cdiv(n_elems, LANES)
    tile_rows = min(1024, _round_up(rows, SUBLANES))
    nblk = _cdiv(rows, tile_rows)
    rows_pad = nblk * tile_rows
    pad = rows_pad * LANES - n_elems
    out2d = jnp.pad(output.reshape(-1), (0, pad)).reshape(rows_pad, LANES)
    tgt2d = jnp.pad(target.reshape(-1), (0, pad)).reshape(rows_pad, LANES)

    # Flattened views for the pooling term (wrapper-side reshapes are glue).
    out0 = output[:, 0].reshape(B * H, W)                        # (B*H, W)
    inp0 = inp[:, 0].astype(jnp.float32).reshape(B * h, w)       # (B*h, w)

    kernel = functools.partial(_srloss_kernel, eta=float(eta),
                               n_elems=n_elems, s=scaling_factor)

    cost = pl.CostEstimate(
        flops=2 * (B * H) * W * w + 2 * (B * h) * (B * H) * w + 10 * n_elems,
        transcendentals=2 * n_elems,
        bytes_accessed=4 * (2 * rows_pad * LANES + B * H * W + B * h * w
                            + nblk * SUBLANES * LANES),
    )

    partials = pl.pallas_call(
        kernel,
        out_shape=jax.ShapeDtypeStruct((nblk * SUBLANES, LANES), jnp.float32),
        grid_spec=pltpu.PrefetchScalarGridSpec(
            num_scalar_prefetch=0,
            grid=(nblk,),
            in_specs=[
                pl.BlockSpec((tile_rows, LANES), lambda i: (i, 0)),
                pl.BlockSpec((tile_rows, LANES), lambda i: (i, 0)),
                pl.BlockSpec((B * H, W), lambda i: (0, 0)),
                pl.BlockSpec((B * h, w), lambda i: (0, 0)),
            ],
            out_specs=pl.BlockSpec((SUBLANES, LANES), lambda i: (i, 0)),
        ),
        compiler_params=pltpu.CompilerParams(
            dimension_semantics=("parallel",),
            vmem_limit_bytes=32 * 1024 * 1024,
        ),
        cost_estimate=cost,
    )(out2d, tgt2d, out0, inp0)

    # Tiny final reduction of the per-block lane-dense partials -> (1, 1).
    return jnp.sum(partials).reshape(1, 1)


def _reference(output, target, inp, eta, s=SCALING_FACTOR):
    # Pure-JAX reference mirroring the PyTorch/scipy forward.
    out0 = output[:, 0]
    B, H, W = out0.shape
    pooled = out0.reshape(B, H // s, s, W // s, s).mean(axis=(2, 4))
    t1 = eta * jnp.mean((inp[:, 0] - pooled) ** 2)
    om = jnp.where(output == 0.0, 1e-20, output)
    oc = 1.0 - output
    oc = jnp.where(oc == 0.0, 1e-20, oc)
    t2 = jnp.mean(target * jnp.log(om) + (1.0 - target) * jnp.log(oc))
    return t1 - t2


if __name__ == "__main__":
    key = jax.random.PRNGKey(0)
    k1, k2, k3 = jax.random.split(key, 3)

    B, C, H, W = 2, 2, 40, 40                 # H, W multiples of scaling_factor=10
    h, w = H // SCALING_FACTOR, W // SCALING_FACTOR
    eta = 0.5

    # output acts like probabilities (strictly inside (0, 1) so log is finite)
    output = jax.random.uniform(k1, (B, C, H, W), jnp.float32, 1e-4, 1.0 - 1e-4)
    target = jax.random.uniform(k2, (B, C, H, W), jnp.float32)
    inp = jax.random.uniform(k3, (B, 1, h, w), jnp.float32)

    loss = sr_loss(output, target, inp, eta)
    jax.block_until_ready(loss)

    ref = _reference(output, target, inp, eta)
    assert loss.shape == (1, 1)
    assert jnp.allclose(loss[0, 0], ref, rtol=1e-4, atol=1e-5), (loss, ref)
    print("KERNEL_OK")
</pallas_src>

<mosaic_0001>
module attributes {stable_mosaic.version = 11 : i64} {
  func.func @_srloss_kernel(%arg0: i32, %arg1: memref<56x128xf32, #tpu.memory_space<vmem>>, %arg2: memref<56x128xf32, #tpu.memory_space<vmem>>, %arg3: memref<80x40xf32, #tpu.memory_space<vmem>>, %arg4: memref<8x4xf32, #tpu.memory_space<vmem>>, %arg5: memref<8x128xf32, #tpu.memory_space<vmem>>) attributes {dimension_semantics = [#tpu.dimension_semantics<parallel>], iteration_bounds = array<i64: 1>, scalar_prefetch = 0 : i64, scratch_operands = 0 : i64, tpu.core_type = #tpu.core_type<tc>, window_params = [{transform_indices = @transform_0, window_bounds = array<i64: 56, 128>}, {transform_indices = @transform_1, window_bounds = array<i64: 56, 128>}, {pipeline_mode = #tpu.pipeline_mode<synchronous>, transform_indices = @transform_2, window_bounds = array<i64: 80, 40>}, {pipeline_mode = #tpu.pipeline_mode<synchronous>, transform_indices = @transform_3, window_bounds = array<i64: 8, 4>}, {transform_indices = @transform_4, window_bounds = array<i64: 8, 128>}]} {
    %c0 = arith.constant 0 : index
    %c0_0 = arith.constant 0 : index
    %0 = vector.load %arg1[%c0, %c0_0] : memref<56x128xf32, #tpu.memory_space<vmem>>, vector<56x128xf32>
    %c0_1 = arith.constant 0 : index
    %c0_2 = arith.constant 0 : index
    %1 = vector.load %arg2[%c0_1, %c0_2] : memref<56x128xf32, #tpu.memory_space<vmem>>, vector<56x128xf32>
    %cst = arith.constant 0.000000e+00 : f32
    %2 = vector.broadcast %cst : f32 to vector<56x128xf32>
    %3 = arith.cmpf oeq, %0, %2 : vector<56x128xf32>
    %cst_3 = arith.constant 9.99999968E-21 : f32
    %4 = vector.broadcast %cst_3 : f32 to vector<56x128xf32>
    %5 = arith.select %3, %4, %0 : vector<56x128xi1>, vector<56x128xf32>
    %cst_4 = arith.constant 1.000000e+00 : f32
    %6 = vector.broadcast %cst_4 : f32 to vector<56x128xf32>
    %7 = arith.subf %6, %0 : vector<56x128xf32>
    %cst_5 = arith.constant 0.000000e+00 : f32
    %8 = vector.broadcast %cst_5 : f32 to vector<56x128xf32>
    %9 = arith.cmpf oeq, %7, %8 : vector<56x128xf32>
    %cst_6 = arith.constant 9.99999968E-21 : f32
    %10 = vector.broadcast %cst_6 : f32 to vector<56x128xf32>
    %11 = arith.select %9, %10, %7 : vector<56x128xi1>, vector<56x128xf32>
    %12 = math.log %5 : vector<56x128xf32>
    %13 = arith.mulf %1, %12 : vector<56x128xf32>
    %cst_7 = arith.constant 1.000000e+00 : f32
    %14 = vector.broadcast %cst_7 : f32 to vector<56x128xf32>
    %15 = arith.subf %14, %1 : vector<56x128xf32>
    %16 = math.log %11 : vector<56x128xf32>
    %17 = arith.mulf %15, %16 : vector<56x128xf32>
    %18 = arith.addf %13, %17 : vector<56x128xf32>
    %cst_8 = arith.constant dense<0.000000e+00> : vector<128xf32>
    %19 = vector.multi_reduction <add>, %18, %cst_8 [0] : vector<56x128xf32> to vector<128xf32>
    %20 = vector.shape_cast %19 : vector<128xf32> to vector<1x128xf32>
    %21 = tpu.iota {dimensions = array<i32: 0>} : vector<8x128xi32>
    %22 = tpu.iota {dimensions = array<i32: 1>} : vector<8x128xi32>
    %c0_i32 = arith.constant 0 : i32
    %23 = vector.broadcast %c0_i32 : i32 to vector<8x128xi32>
    %24 = arith.cmpi eq, %21, %23 : vector<8x128xi32>
    %cst_9 = arith.constant 1.562500e-04 : f32
    %25 = vector.broadcast %cst_9 : f32 to vector<1x128xf32>
    %26 = arith.mulf %20, %25 : vector<1x128xf32>
    %cst_10 = arith.constant 0.000000e+00 : f32
    %27 = vector.broadcast %cst_10 : f32 to vector<1x128xf32>
    %28 = arith.subf %27, %26 : vector<1x128xf32>
    %cst_11 = arith.constant 0.000000e+00 : f32
    %29 = vector.shape_cast %28 : vector<1x128xf32> to vector<1x128xf32>
    %30 = vector.broadcast %29 : vector<1x128xf32> to vector<8x128xf32>
    %31 = vector.broadcast %cst_11 : f32 to vector<8x128xf32>
    %32 = arith.select %24, %30, %31 : vector<8x128xi1>, vector<8x128xf32>
    %c0_12 = arith.constant 0 : index
    %c0_13 = arith.constant 0 : index
    %33 = vector.load %arg5[%c0_12, %c0_13] : memref<8x128xf32, #tpu.memory_space<vmem>>, vector<8x128xf32>
    tpu.vector_store %arg5[%c0_12, %c0_13], %32 {strides = array<i32>} : memref<8x128xf32, #tpu.memory_space<vmem>>, vector<8x128xf32>,
    %c0_i32_14 = arith.constant 0 : i32
    %34 = arith.cmpi eq, %arg0, %c0_i32_14 : i32
    %35 = arith.extui %34 : i1 to i32
    %c0_i32_15 = arith.constant 0 : i32
    %36 = arith.cmpi ne, %35, %c0_i32_15 : i32
    scf.if %36 {
      %37 = tpu.iota {dimensions = array<i32: 0>} : vector<40x4xi32>
      %38 = tpu.iota {dimensions = array<i32: 1>} : vector<40x4xi32>
      %c10_i32 = arith.constant 10 : i32
      %39 = vector.broadcast %c10_i32 : i32 to vector<40x4xi32>
      %40 = arith.muli %38, %39 : vector<40x4xi32>
      %41 = arith.cmpi sge, %37, %40 : vector<40x4xi32>
      %c1_i32 = arith.constant 1 : i32
      %42 = vector.broadcast %c1_i32 : i32 to vector<40x4xi32>
      %43 = arith.addi %38, %42 : vector<40x4xi32>
      %c10_i32_16 = arith.constant 10 : i32
      %44 = vector.broadcast %c10_i32_16 : i32 to vector<40x4xi32>
      %45 = arith.muli %43, %44 : vector<40x4xi32>
      %46 = arith.cmpi slt, %37, %45 : vector<40x4xi32>
      %47 = arith.andi %41, %46 : vector<40x4xi1>
      %cst_17 = arith.constant 1.000000e-01 : f32
      %cst_18 = arith.constant 0.000000e+00 : f32
      %48 = vector.broadcast %cst_17 : f32 to vector<40x4xf32>
      %49 = vector.broadcast %cst_18 : f32 to vector<40x4xf32>
      %50 = arith.select %47, %48, %49 : vector<40x4xi1>, vector<40x4xf32>
      %51 = tpu.iota {dimensions = array<i32: 0>} : vector<8x80xi32>
      %52 = tpu.iota {dimensions = array<i32: 1>} : vector<8x80xi32>
      %c10_i32_19 = arith.constant 10 : i32
      %53 = vector.broadcast %c10_i32_19 : i32 to vector<8x80xi32>
      %54 = arith.muli %51, %53 : vector<8x80xi32>
      %55 = arith.cmpi sge, %52, %54 : vector<8x80xi32>
      %c1_i32_20 = arith.constant 1 : i32
      %56 = vector.broadcast %c1_i32_20 : i32 to vector<8x80xi32>
      %57 = arith.addi %51, %56 : vector<8x80xi32>
      %c10_i32_21 = arith.constant 10 : i32
      %58 = vector.broadcast %c10_i32_21 : i32 to vector<8x80xi32>
      %59 = arith.muli %57, %58 : vector<8x80xi32>
      %60 = arith.cmpi slt, %52, %59 : vector<8x80xi32>
      %61 = arith.andi %55, %60 : vector<8x80xi1>
      %cst_22 = arith.constant 1.000000e-01 : f32
      %cst_23 = arith.constant 0.000000e+00 : f32
      %62 = vector.broadcast %cst_22 : f32 to vector<8x80xf32>
      %63 = vector.broadcast %cst_23 : f32 to vector<8x80xf32>
      %64 = arith.select %61, %62, %63 : vector<8x80xi1>, vector<8x80xf32>
      %c0_24 = arith.constant 0 : index
      %c0_25 = arith.constant 0 : index
      %65 = vector.load %arg3[%c0_24, %c0_25] : memref<80x40xf32, #tpu.memory_space<vmem>>, vector<80x40xf32>
      %cst_26 = arith.constant dense<0.000000e+00> : vector<80x4xf32>
      %66 = tpu.matmul %65, %50, %cst_26 {dimension_numbers = #tpu.dot_dimension_numbers<[1], [0], [0], [1], [0, 0, 1, 1], [], []>} : vector<80x40xf32>, vector<40x4xf32>, vector<80x4xf32> -> vector<80x4xf32>
      %cst_27 = arith.constant dense<0.000000e+00> : vector<8x4xf32>
      %67 = tpu.matmul %64, %66, %cst_27 {dimension_numbers = #tpu.dot_dimension_numbers<[1], [0], [0], [1], [0, 0, 1, 1], [], []>} : vector<8x80xf32>, vector<80x4xf32>, vector<8x4xf32> -> vector<8x4xf32>
      %c0_28 = arith.constant 0 : index
      %c0_29 = arith.constant 0 : index
      %68 = vector.load %arg4[%c0_28, %c0_29] : memref<8x4xf32, #tpu.memory_space<vmem>>, vector<8x4xf32>
      %69 = arith.subf %68, %67 : vector<8x4xf32>
      %70 = arith.mulf %69, %69 : vector<8x4xf32>
      %71 = vector.shape_cast %70 : vector<8x4xf32> to vector<1x8x4xf32>
      %cst_30 = arith.constant dense<0.000000e+00> : vector<1xf32>
      %72 = vector.multi_reduction <add>, %71, %cst_30 [1, 2] : vector<1x8x4xf32> to vector<1xf32>
      %73 = vector.shape_cast %72 : vector<1xf32> to vector<1x1x1xf32>
      %74 = vector.extract %73[0, 0, 0] : f32 from vector<1x1x1xf32>
      %cst_31 = arith.constant 5.000000e-01 : f32
      %75 = arith.mulf %cst_31, %74 : f32
      %cst_32 = arith.constant 3.125000e-02 : f32
      %76 = arith.mulf %75, %cst_32 : f32
      %c0_33 = arith.constant 0 : index
      %c0_34 = arith.constant 0 : index
      %77 = vector.load %arg5[%c0_33, %c0_34] : memref<8x128xf32, #tpu.memory_space<vmem>>, vector<8x128xf32>
      %c0_i32_35 = arith.constant 0 : i32
      %78 = vector.broadcast %c0_i32_35 : i32 to vector<8x128xi32>
      %79 = arith.cmpi eq, %21, %78 : vector<8x128xi32>
      %c0_i32_36 = arith.constant 0 : i32
      %80 = vector.broadcast %c0_i32_36 : i32 to vector<8x128xi32>
      %81 = arith.cmpi eq, %22, %80 : vector<8x128xi32>
      %82 = arith.andi %79, %81 : vector<8x128xi1>
      %cst_37 = arith.constant 0.000000e+00 : f32
      %83 = vector.broadcast %76 : f32 to vector<8x128xf32>
      %84 = vector.broadcast %cst_37 : f32 to vector<8x128xf32>
      %85 = arith.select %82, %83, %84 : vector<8x128xi1>, vector<8x128xf32>
      %86 = arith.addf %77, %85 : vector<8x128xf32>
      %c0_38 = arith.constant 0 : index
      %c0_39 = arith.constant 0 : index
      %87 = vector.load %arg5[%c0_38, %c0_39] : memref<8x128xf32, #tpu.memory_space<vmem>>, vector<8x128xf32>
      tpu.vector_store %arg5[%c0_38, %c0_39], %86 {strides = array<i32>} : memref<8x128xf32, #tpu.memory_space<vmem>>, vector<8x128xf32>,
    } else {
    }
    return
  }
  func.func @transform_0(%arg0: i32) -> (i32, i32) {
    %c0_i32 = arith.constant 0 : i32
    %c0_i32_0 = arith.constant 0 : i32
    return %arg0, %c0_i32 : i32, i32
  }
  func.func @transform_1(%arg0: i32) -> (i32, i32) {
    %c0_i32 = arith.constant 0 : i32
    %c0_i32_0 = arith.constant 0 : i32
    return %arg0, %c0_i32 : i32, i32
  }
  func.func @transform_2(%arg0: i32) -> (i32, i32) {
    %c0_i32 = arith.constant 0 : i32
    %c0_i32_0 = arith.constant 0 : i32
    %c0_i32_1 = arith.constant 0 : i32
    return %c0_i32, %c0_i32_0 : i32, i32
  }
  func.func @transform_3(%arg0: i32) -> (i32, i32) {
    %c0_i32 = arith.constant 0 : i32
    %c0_i32_0 = arith.constant 0 : i32
    %c0_i32_1 = arith.constant 0 : i32
    return %c0_i32, %c0_i32_0 : i32, i32
  }
  func.func @transform_4(%arg0: i32) -> (i32, i32) {
    %c0_i32 = arith.constant 0 : i32
    %c0_i32_0 = arith.constant 0 : i32
    return %arg0, %c0_i32 : i32, i32
  }
}

</mosaic_0001>

<llo_original>
// kernel: tpu_custom_call.1
$region0: #{tpu_custom_call.1}
  #allocation0 [shape = 'u32[]', space=smem, size = 0x4, offset = 0x4, fixed_abs, tag = 'smem constant byte address 0x4 - core index']
  #allocation1 [shape = 'u32[144,128]{1,0:T(1,128)}', space=vmem, size = 0x12000, scoped, tag = 'internal scratch']
  %s0 = inlined_call_operand.vmem [shape: f32[56,128], index: 0, kind: input, shape index: {}]
  %s1 = inlined_call_operand.vmem [shape: f32[56,128], index: 1, kind: input, shape index: {}]
  %s2 = inlined_call_operand.vmem [shape: f32[80,40], index: 2, kind: input, shape index: {}]
  %s3 = inlined_call_operand.vmem [shape: f32[8,4], index: 3, kind: input, shape index: {}]
  %s4 = inlined_call_operand.hbm [shape: f32[8,128], index: 4, kind: output, shape index: {}]
  %s5 = sld [smem:[#allocation0]]
  $region30: #{tpu_custom_call.1} parent=0
    _
  %s7 = ssub.s32 1, %s5
  %s8 = scalar_select 0, %s7, %s5
  $region1: #{tpu_custom_call.1} parent=0
    #allocation2 [shape = 'u8[4096]{0}', space=vmem, size = 0x1000, scoped, tag = 'output window, operand 0, single buffered']
    #allocation3 [shape = 's32[1]{0}', space=sflag, size = 0x4, scoped, tag = 'scoped memory for tpu_custom_call.1']
    %9 = vsyncpa [#allocation3], 0
    // Predicated region
    $region2: #{tpu_custom_call.1} parent=1 // pred_check
      _
    $region3: #{tpu_custom_call.1} parent=1 // pred_check_branch
      %11 = sbr.rel (0) target = $region5
    $region4: #{tpu_custom_call.1} parent=1 // pred_region
      _
    $region5: #{tpu_custom_call.1} parent=1 // pred_fallthru
      _
    // Predicated region
    $region6: #{tpu_custom_call.1} parent=1 // pred_check
      _
    $region7: #{tpu_custom_call.1} parent=1 // pred_check_branch
      %13 = sbr.rel (0) target = $region9
    $region8: #{tpu_custom_call.1} parent=1 // pred_region
      _
    $region9: #{tpu_custom_call.1} parent=1 // pred_fallthru
      _
    // Predicated region
    $region10: #{tpu_custom_call.1} parent=1 // pred_check
      _
    $region11: #{tpu_custom_call.1} parent=1 // pred_check_branch
      %15 = sbr.rel (0) target = $region13
    $region12: #{tpu_custom_call.1} parent=1 // pred_region
      _
    $region13: #{tpu_custom_call.1} parent=1 // pred_fallthru
      _
    // Predicated region
    $region14: #{tpu_custom_call.1} parent=1 // pred_check
      _
    $region15: #{tpu_custom_call.1} parent=1 // pred_check_branch
      %17 = sbr.rel (0) target = $region17
    $region16: #{tpu_custom_call.1} parent=1 // pred_region
      _
    $region17: #{tpu_custom_call.1} parent=1 // pred_fallthru
      _
    %v18 = vld [vmem:[%s0] sm:$0xff]
    %v19 = vld [vmem:[%s0 + $0x8] sm:$0xff]
    %v20 = vld [vmem:[%s0 + $0x10] sm:$0xff]
    %v21 = vld [vmem:[%s0 + $0x18] sm:$0xff]
    %v22 = vld [vmem:[%s0 + $0x20] sm:$0xff]
    %v23 = vld [vmem:[%s0 + $0x28] sm:$0xff]
    %v24 = vld [vmem:[%s0 + $0x30] sm:$0xff]
    %v25 = vld [vmem:[%s1] sm:$0xff]
    %v26 = vld [vmem:[%s1 + $0x8] sm:$0xff]
    %v27 = vld [vmem:[%s1 + $0x10] sm:$0xff]
    %v28 = vld [vmem:[%s1 + $0x18] sm:$0xff]
    %v29 = vld [vmem:[%s1 + $0x20] sm:$0xff]
    %v30 = vld [vmem:[%s1 + $0x28] sm:$0xff]
    %v31 = vld [vmem:[%s1 + $0x30] sm:$0xff]
    %vm32 = vcmp.eq.f32.partialorder %v18, 0.0
    %vm33 = vcmp.eq.f32.partialorder %v19, 0.0
    %vm34 = vcmp.eq.f32.partialorder %v20, 0.0
    %vm35 = vcmp.eq.f32.partialorder %v21, 0.0
    %vm36 = vcmp.eq.f32.partialorder %v22, 0.0
    %vm37 = vcmp.eq.f32.partialorder %v23, 0.0
    %vm38 = vcmp.eq.f32.partialorder %v24, 0.0
    %v39 = vsel %vm32, 1e-20, %v18
    %v40 = vsel %vm33, 1e-20, %v19
    %v41 = vsel %vm34, 1e-20, %v20
    %v42 = vsel %vm35, 1e-20, %v21
    %v43 = vsel %vm36, 1e-20, %v22
    %v44 = vsel %vm37, 1e-20, %v23
    %v45 = vsel %vm38, 1e-20, %v24
    %v46 = vsub.f32 1.0, %v18
    %v47 = vsub.f32 1.0, %v19
    %v48 = vsub.f32 1.0, %v20
    %v49 = vsub.f32 1.0, %v21
    %v50 = vsub.f32 1.0, %v22
    %v51 = vsub.f32 1.0, %v23
    %v52 = vsub.f32 1.0, %v24
    %vm53 = vcmp.eq.f32.partialorder %v46, 0.0
    %vm54 = vcmp.eq.f32.partialorder %v47, 0.0
    %vm55 = vcmp.eq.f32.partialorder %v48, 0.0
    %vm56 = vcmp.eq.f32.partialorder %v49, 0.0
    %vm57 = vcmp.eq.f32.partialorder %v50, 0.0
    %vm58 = vcmp.eq.f32.partialorder %v51, 0.0
    %vm59 = vcmp.eq.f32.partialorder %v52, 0.0
    %v60 = vsel %vm53, 1e-20, %v46
    %v61 = vsel %vm54, 1e-20, %v47
    %v62 = vsel %vm55, 1e-20, %v48
    %v63 = vsel %vm56, 1e-20, %v49
    %v64 = vsel %vm57, 1e-20, %v50
    %v65 = vsel %vm58, 1e-20, %v51
    %v66 = vsel %vm59, 1e-20, %v52
    %v67 = vlog2.pop %v39
    %v68 = vmul.f32 %v67, 0.6931472
    %v69 = vlog2.pop %v40
    %v70 = vmul.f32 %v69, 0.6931472
    %v71 = vlog2.pop %v41
    %v72 = vmul.f32 %v71, 0.6931472
    %v73 = vlog2.pop %v42
    %v74 = vmul.f32 %v73, 0.6931472
    %v75 = vlog2.pop %v43
    %v76 = vmul.f32 %v75, 0.6931472
    %v77 = vlog2.pop %v44
    %v78 = vmul.f32 %v77, 0.6931472
    %v79 = vlog2.pop %v45
    %v80 = vmul.f32 %v79, 0.6931472
    %v81 = vmul.f32 %v25, %v68
    %v82 = vmul.f32 %v26, %v70
    %v83 = vmul.f32 %v27, %v72
    %v84 = vmul.f32 %v28, %v74
    %v85 = vmul.f32 %v29, %v76
    %v86 = vmul.f32 %v30, %v78
    %v87 = vmul.f32 %v31, %v80
    %v88 = vsub.f32 1.0, %v25
    %v89 = vsub.f32 1.0, %v26
    %v90 = vsub.f32 1.0, %v27
    %v91 = vsub.f32 1.0, %v28
    %v92 = vsub.f32 1.0, %v29
    %v93 = vsub.f32 1.0, %v30
    %v94 = vsub.f32 1.0, %v31
    %v95 = vlog2.pop %v60
    %v96 = vmul.f32 %v95, 0.6931472
    %v97 = vlog2.pop %v61
    %v98 = vmul.f32 %v97, 0.6931472
    %v99 = vlog2.pop %v62
    %v100 = vmul.f32 %v99, 0.6931472
    %v101 = vlog2.pop %v63
    %v102 = vmul.f32 %v101, 0.6931472
    %v103 = vlog2.pop %v64
    %v104 = vmul.f32 %v103, 0.6931472
    %v105 = vlog2.pop %v65
    %v106 = vmul.f32 %v105, 0.6931472
    %v107 = vlog2.pop %v66
    %v108 = vmul.f32 %v107, 0.6931472
    %v109 = vmul.f32 %v88, %v96
    %v110 = vmul.f32 %v89, %v98
    %v111 = vmul.f32 %v90, %v100
    %v112 = vmul.f32 %v91, %v102
    %v113 = vmul.f32 %v92, %v104
    %v114 = vmul.f32 %v93, %v106
    %v115 = vmul.f32 %v94, %v108
    %v116 = vadd.f32 %v81, %v109
    %v117 = vadd.f32 %v82, %v110
    %v118 = vadd.f32 %v83, %v111
    %v119 = vadd.f32 %v84, %v112
    %v120 = vadd.f32 %v85, %v113
    %v121 = vadd.f32 %v86, %v114
    %v122 = vadd.f32 %v87, %v115
    %v123 = vadd.f32 %v116, %v117
    %v124 = vadd.f32 %v123, %v118
    %v125 = vadd.f32 %v124, %v119
    %v126 = vadd.f32 %v125, %v120
    %v127 = vadd.f32 %v126, %v121
    %v128 = vadd.f32 %v127, %v122
    %v129 = vrot.slane %v128, 4
    %v130 = vadd.f32 %v128, %v129
    %v131 = vrot.slane %v130, 2
    %v132 = vadd.f32 %v130, %v131
    %v133 = vrot.slane %v132, 1
    %v134 = vadd.f32 %v132, %v133
    %v135 = vlaneseq
    %v136 = vshrl.u32 %v135, 7
    %v137 = vlaneseq
    %v138 = vand.u32 %v137, 127
    %vm139 = vcmp.eq.s32.totalorder %v136, 0
    %v140 = vmul.f32 %v134, 0.00015625
    %v141 = vsub.f32 0.0, %v140
    %v142 = vsel %vm139, %v141, 0.0
    %143 = vst [vmem:[#allocation2] sm:$0xff] %v142
    %p144 = scmp.eq.s32.totalorder 0, 0
    // Predicated region
    $region18: #{tpu_custom_call.1} parent=1 // pred_check
      %p145 = pneg %p144
    $region19: #{tpu_custom_call.1} parent=1 // pred_check_branch
      %147 = sbr.rel (%p145) target = $region21
    $region20: #{tpu_custom_call.1} parent=1 // pred_region
      %v148 = vadd.s32 %v136, 8
      %v149 = vadd.s32 %v136, 16
      %v150 = vadd.s32 %v136, 24
      %v151 = vadd.s32 %v136, 32
      %v152 = vmul.u32 %v138, 10
      %vm153 = vcmp.ge.s32.totalorder %v136, %v152
      %vm154 = vcmp.ge.s32.totalorder %v148, %v152
      %vm155 = vcmp.ge.s32.totalorder %v149, %v152
      %vm156 = vcmp.ge.s32.totalorder %v150, %v152
      %vm157 = vcmp.ge.s32.totalorder %v151, %v152
      %v158 = vadd.s32 %v138, 1
      %v159 = vmul.u32 %v158, 10
      %vm160 = vcmp.lt.s32.totalorder %v136, %v159
      %vm161 = vcmp.lt.s32.totalorder %v148, %v159
      %vm162 = vcmp.lt.s32.totalorder %v149, %v159
      %vm163 = vcmp.lt.s32.totalorder %v150, %v159
      %vm164 = vcmp.lt.s32.totalorder %v151, %v159
      %vm165 = vmand %vm153, %vm160
      %vm166 = vmand %vm154, %vm161
      %vm167 = vmand %vm155, %vm162
      %vm168 = vmand %vm156, %vm163
      %vm169 = vmand %vm157, %vm164
      %v170 = vsel %vm165, 0.1, 0.0
      %v171 = vsel %vm166, 0.1, 0.0
      %v172 = vsel %vm167, 0.1, 0.0
      %v173 = vsel %vm168, 0.1, 0.0
      %v174 = vsel %vm169, 0.1, 0.0
      %v175 = vmul.u32 %v136, 10
      %vm176 = vcmp.ge.s32.totalorder %v138, %v175
      %v177 = vadd.s32 %v136, 1
      %v178 = vmul.u32 %v177, 10
      %vm179 = vcmp.lt.s32.totalorder %v138, %v178
      %vm180 = vmand %vm176, %vm179
      %v181 = vsel %vm180, 0.1, 0.0
      %v182 = vld [vmem:[%s2] sm:$0xff]
      %v183 = vld [vmem:[%s2 + $0x8] sm:$0xff]
      %v184 = vld [vmem:[%s2 + $0x10] sm:$0xff]
      %v185 = vld [vmem:[%s2 + $0x18] sm:$0xff]
      %v186 = vld [vmem:[%s2 + $0x20] sm:$0xff]
      %v187 = vld [vmem:[%s2 + $0x28] sm:$0xff]
      %v188 = vld [vmem:[%s2 + $0x30] sm:$0xff]
      %v189 = vld [vmem:[%s2 + $0x38] sm:$0xff]
      %v190 = vld [vmem:[%s2 + $0x40] sm:$0xff]
      %v191 = vld [vmem:[%s2 + $0x48] sm:$0xff]
      %vm192 = vcmask 326656
      %v194 = vsel %vm192, %v182, 0
      %v197 = vsel %vm192, %v183, 0
      %v200 = vsel %vm192, %v184, 0
      %v203 = vsel %vm192, %v185, 0
      %v206 = vsel %vm192, %v186, 0
      %v209 = vsel %vm192, %v187, 0
      %v212 = vsel %vm192, %v188, 0
      %v215 = vsel %vm192, %v189, 0
      %v218 = vsel %vm192, %v190, 0
      %v221 = vsel %vm192, %v191, 0
      %223 = vmatprep.subr.mxu0 0.0
      %224 = vmatpush1.msra.mxu0 %v170
      %225 = vmatprep.subr.mxu0 0.0
      %226 = vmatpush1.msra.mxu0 %v171
      %227 = vmatprep.subr.mxu0 0.0
      %228 = vmatpush1.msra.mxu0 %v172
      %229 = vmatprep.subr.mxu0 0.0
      %230 = vmatpush1.msra.mxu0 %v173
      %231 = vmatprep.subr.mxu0 0.0
      %232 = vmatpush1.msra.mxu0 %v174
      %233 = vmatprep.subr.mxu0 0.0
      %234 = vmatpush1.msra.mxu0 0.0
      %235 = vmatprep.subr.mxu0 0.0
      %236 = vmatpush1.msra.mxu0 0.0
      %237 = vmatprep.subr.mxu0 0.0
      %238 = vmatpush1.msra.mxu0 0.0
      %239 = vmatprep.subr.mxu0 0.0
      %240 = vmatpush1.msra.mxu0 0.0
      %241 = vmatprep.subr.mxu0 0.0
      %242 = vmatpush1.msra.mxu0 0.0
      %243 = vmatprep.subr.mxu0 0.0
      %244 = vmatpush1.msra.mxu0 0.0
      %245 = vmatprep.subr.mxu0 0.0
      %246 = vmatpush1.msra.mxu0 0.0
      %247 = vmatprep.subr.mxu0 0.0
      %248 = vmatpush1.msra.mxu0 0.0
      %249 = vmatprep.subr.mxu0 0.0
      %250 = vmatpush1.msra.mxu0 0.0
      %251 = vmatprep.subr.mxu0 0.0
      %252 = vmatpush1.msra.mxu0 0.0
      %253 = vmatprep.subr.mxu0 0.0
      %254 = vmatpush1.msra.mxu0 0.0
      %255 = vmatprep.subr.mxu0 0.0
      %256 = vmatpush1.msra.mxu0 0.0
      %257 = vmatprep.subr.mxu0 0.0
      %258 = vmatpush1.msra.mxu0 0.0
      %259 = vmatprep.subr.mxu0 0.0
      %260 = vmatpush1.msra.mxu0 0.0
      %261 = vmatprep.subr.mxu0 0.0
      %262 = vmatpush1.msra.mxu0 0.0
      %263 = vmatprep.subr.mxu0 0.0
      %264 = vmatpush1.msra.mxu0 0.0
      %265 = vmatprep.subr.mxu0 0.0
      %266 = vmatpush1.msra.mxu0 0.0
      %267 = vmatprep.subr.mxu0 0.0
      %268 = vmatpush1.msra.mxu0 0.0
      %269 = vmatprep.subr.mxu0 0.0
      %270 = vmatpush1.msra.mxu0 0.0
      %271 = vmatprep.subr.mxu0 0.0
      %272 = vmatpush1.msra.mxu0 0.0
      %273 = vmatprep.subr.mxu0 0.0
      %274 = vmatpush1.msra.mxu0 0.0
      %275 = vmatprep.subr.mxu0 0.0
      %276 = vmatpush1.msra.mxu0 0.0
      %277 = vmatprep.subr.mxu0 0.0
      %278 = vmatpush1.msra.mxu0 0.0
      %279 = vmatprep.subr.mxu0 0.0
      %280 = vmatpush1.msra.mxu0 0.0
      %281 = vmatprep.subr.mxu0 0.0
      %282 = vmatpush1.msra.mxu0 0.0
      %283 = vmatprep.subr.mxu0 0.0
      %284 = vmatpush1.msra.mxu0 0.0
      %285 = vmatprep.subr.mxu0 0.0
      %286 = vmatpush1.msra.mxu0 0.0
      %287 = vmatprep.mubr.f32.mxu0 0.0
      %288 = vmatmul.mubr.f32.gmra.mrb[0].mxu0 %v194
      %v289 = vpop.f32.mrb[0].mxu0
      %v290 = vadd.f32 0.0, %v289
      %v291 = vpop.f32.mrb[0].mxu0
      %292 = vmatprep.mubr.f32.mxu0 0.0
      %293 = vmatmul.mubr.f32.gmra.mrb[0].mxu0 %v197
      %v294 = vpop.f32.mrb[0].mxu0
      %v295 = vadd.f32 0.0, %v294
      %v296 = vpop.f32.mrb[0].mxu0
      %297 = vmatprep.mubr.f32.mxu0 0.0
      %298 = vmatmul.mubr.f32.gmra.mrb[0].mxu0 %v200
      %v299 = vpop.f32.mrb[0].mxu0
      %v300 = vadd.f32 0.0, %v299
      %v301 = vpop.f32.mrb[0].mxu0
      %302 = vmatprep.mubr.f32.mxu0 0.0
      %303 = vmatmul.mubr.f32.gmra.mrb[0].mxu0 %v203
      %v304 = vpop.f32.mrb[0].mxu0
      %v305 = vadd.f32 0.0, %v304
      %v306 = vpop.f32.mrb[0].mxu0
      %307 = vmatprep.mubr.f32.mxu0 0.0
      %308 = vmatmul.mubr.f32.gmra.mrb[0].mxu0 %v206
      %v309 = vpop.f32.mrb[0].mxu0
      %v310 = vadd.f32 0.0, %v309
      %v311 = vpop.f32.mrb[0].mxu0
      %312 = vmatprep.mubr.f32.mxu0 0.0
      %313 = vmatmul.mubr.f32.gmra.mrb[0].mxu0 %v209
      %v314 = vpop.f32.mrb[0].mxu0
      %v315 = vadd.f32 0.0, %v314
      %v316 = vpop.f32.mrb[0].mxu0
      %317 = vmatprep.mubr.f32.mxu0 0.0
      %318 = vmatmul.mubr.f32.gmra.mrb[0].mxu0 %v212
      %v319 = vpop.f32.mrb[0].mxu0
      %v320 = vadd.f32 0.0, %v319
      %v321 = vpop.f32.mrb[0].mxu0
      %322 = vmatprep.mubr.f32.mxu0 0.0
      %323 = vmatmul.mubr.f32.gmra.mrb[0].mxu0 %v215
      %v324 = vpop.f32.mrb[0].mxu0
      %v325 = vadd.f32 0.0, %v324
      %v326 = vpop.f32.mrb[0].mxu0
      %327 = vmatprep.mubr.f32.mxu0 0.0
      %328 = vmatmul.mubr.f32.gmra.mrb[0].mxu0 %v218
      %v329 = vpop.f32.mrb[0].mxu0
      %v330 = vadd.f32 0.0, %v329
      %v331 = vpop.f32.mrb[0].mxu0
      %332 = vmatprep.mubr.f32.mxu0 0.0
      %333 = vmatmul.mubr.f32.gmra.mrb[0].mxu0 %v221
      %v334 = vpop.f32.mrb[0].mxu0
      %v335 = vadd.f32 0.0, %v334
      %v336 = vpop.f32.mrb[0].mxu0
      %337 = vdwg.mxu0
      %vm338 = vcmask 654336
      %v340 = vsel %vm338, %v181, 0
      %342 = vmatprep.subr.mxu0 0.0
      %343 = vmatpush1.msra.mxu0 %v290
      %344 = vmatprep.subr.mxu0 0.0
      %345 = vmatpush1.msra.mxu0 %v295
      %346 = vmatprep.subr.mxu0 0.0
      %347 = vmatpush1.msra.mxu0 %v300
      %348 = vmatprep.subr.mxu0 0.0
      %349 = vmatpush1.msra.mxu0 %v305
      %350 = vmatprep.subr.mxu0 0.0
      %351 = vmatpush1.msra.mxu0 %v310
      %352 = vmatprep.subr.mxu0 0.0
      %353 = vmatpush1.msra.mxu0 %v315
      %354 = vmatprep.subr.mxu0 0.0
      %355 = vmatpush1.msra.mxu0 %v320
      %356 = vmatprep.subr.mxu0 0.0
      %357 = vmatpush1.msra.mxu0 %v325
      %358 = vmatprep.subr.mxu0 0.0
      %359 = vmatpush1.msra.mxu0 %v330
      %360 = vmatprep.subr.mxu0 0.0
      %361 = vmatpush1.msra.mxu0 %v335
      %362 = vmatprep.subr.mxu0 0.0
      %363 = vmatpush1.msra.mxu0 0.0
      %364 = vmatprep.subr.mxu0 0.0
      %365 = vmatpush1.msra.mxu0 0.0
      %366 = vmatprep.subr.mxu0 0.0
      %367 = vmatpush1.msra.mxu0 0.0
      %368 = vmatprep.subr.mxu0 0.0
      %369 = vmatpush1.msra.mxu0 0.0
      %370 = vmatprep.subr.mxu0 0.0
      %371 = vmatpush1.msra.mxu0 0.0
      %372 = vmatprep.subr.mxu0 0.0
      %373 = vmatpush1.msra.mxu0 0.0
      %374 = vmatprep.subr.mxu0 0.0
      %375 = vmatpush1.msra.mxu0 0.0
      %376 = vmatprep.subr.mxu0 0.0
      %377 = vmatpush1.msra.mxu0 0.0
      %378 = vmatprep.subr.mxu0 0.0
      %379 = vmatpush1.msra.mxu0 0.0
      %380 = vmatprep.subr.mxu0 0.0
      %381 = vmatpush1.msra.mxu0 0.0
      %382 = vmatprep.subr.mxu0 0.0
      %383 = vmatpush1.msra.mxu0 0.0
      %384 = vmatprep.subr.mxu0 0.0
      %385 = vmatpush1.msra.mxu0 0.0
      %386 = vmatprep.subr.mxu0 0.0
      %387 = vmatpush1.msra.mxu0 0.0
      %388 = vmatprep.subr.mxu0 0.0
      %389 = vmatpush1.msra.mxu0 0.0
      %390 = vmatprep.subr.mxu0 0.0
      %391 = vmatpush1.msra.mxu0 0.0
      %392 = vmatprep.subr.mxu0 0.0
      %393 = vmatpush1.msra.mxu0 0.0
      %394 = vmatprep.subr.mxu0 0.0
      %395 = vmatpush1.msra.mxu0 0.0
      %396 = vmatprep.subr.mxu0 0.0
      %397 = vmatpush1.msra.mxu0 0.0
      %398 = vmatprep.subr.mxu0 0.0
      %399 = vmatpush1.msra.mxu0 0.0
      %400 = vmatprep.subr.mxu0 0.0
      %401 = vmatpush1.msra.mxu0 0.0
      %402 = vmatprep.subr.mxu0 0.0
      %403 = vmatpush1.msra.mxu0 0.0
      %404 = vmatprep.subr.mxu0 0.0
      %405 = vmatpush1.msra.mxu0 0.0
      %406 = vmatprep.mubr.f32.mxu0 0.0
      %407 = vmatmul.mubr.f32.gmra.mrb[0].mxu0 %v340
      %v408 = vpop.f32.mrb[0].mxu0
      %v409 = vadd.f32 0.0, %v408
      %v410 = vpop.f32.mrb[0].mxu0
      %411 = vdwg.mxu0
      %v412 = vld [vmem:[%s3] sm:$0xff]
      %v413 = vsub.f32 %v412, %v409
      %v414 = vmul.f32 %v413, %v413
      %vm415 = vcmask 31744
      %v416 = vsel %vm415, %v414, 0.0
      %417 = vadd.xlane.f32.xlu0 %v416
      %v418 = vpop.xlane.xlu0 %417
      %v419 = vrot.slane %v418, 4
      %v420 = vadd.f32 %v418, %v419
      %v421 = vrot.slane %v420, 2
      %v422 = vadd.f32 %v420, %v421
      %v423 = vrot.slane %v422, 1
      %v424 = vadd.f32 %v422, %v423
      %s425 = vtos %v424
      %s426 = smul.f32 %s425, 0.5
      %s427 = smul.f32 %s426, 0.03125
      %v428 = vld [vmem:[#allocation2] sm:$0xff]
      %vm429 = vcmp.eq.s32.totalorder %v138, 0
      %vm430 = vmand %vm139, %vm429
      %v431 = vstv %s427
      %v432 = vsel %vm430, %v431, 0.0
      %v433 = vadd.f32 %v428, %v432
      %434 = vst [vmem:[#allocation2] sm:$0xff] %v433
    $region21: #{tpu_custom_call.1} parent=1 // pred_fallthru
      _
    // Predicated region
    $region22: #{tpu_custom_call.1} parent=1 // pred_check
      _
    $region23: #{tpu_custom_call.1} parent=1 // pred_check_branch
      %436 = sbr.rel (0) target = $region25
    $region24: #{tpu_custom_call.1} parent=1 // pred_region
      %s438 = ssub.s32 128, 128
      %439 = vsyncadd [#allocation3], %s438
      %s441 = sshll.u32 [#allocation2], 4
      %s442 = int_to_ptr.vmem [resolvable:$true] %s441
      %444 = dma.vmem_to_hbm [thread:$0]  %s442, 128, %s4, [#allocation3]
    $region25: #{tpu_custom_call.1} parent=1 // pred_fallthru
      _
    // Predicated region
    $region26: #{tpu_custom_call.1} parent=1 // pred_check
      _
    $region27: #{tpu_custom_call.1} parent=1 // pred_check_branch
      %446 = sbr.rel (0) target = $region29
    $region28: #{tpu_custom_call.1} parent=1 // pred_region
      %447 = dma.done [#allocation3], 128
    $region29: #{tpu_custom_call.1} parent=1 // pred_fallthru
      _
    %448 = vsyncpa [#allocation3], 1

</llo_original>
